<compile_context>
chip_gen: v7x
topology: tpu7x:2x2x1
jax: 0.10.0
libtpu: 0.0.40
codegen_flags: <defaults>
</compile_context>

<pallas_src>
import functools

import jax
import jax.numpy as jnp
from jax.experimental import pallas as pl
from jax.experimental.pallas import tpu as pltpu

HWGQ_STEPS = {1: 0.799, 2: 0.538, 3: 0.3217, 4: 0.185}
GAUSS_STEPS = {1: 1.596, 2: 0.996, 3: 0.586, 4: 0.336}

ABITS = (2, 4)   # allow8bitprec=False
WBITS = (2, 4)


def _round_up(x, m):
    return (x + m - 1) // m * m


# ---------------------------------------------------------------------------
# Pallas kernel: fused mixed-bit HWGQ activation quantization + conv matmul
# ---------------------------------------------------------------------------
def _mixconv_kernel(gamma_ref, patch_ref, w_ref, o_ref, *, abits):
    x = patch_ref[...]                             # (tm, Kp) f32
    xr = jnp.maximum(x, 0.0)                       # shared ReLU half of HWGQ clamp
    act = jnp.zeros_like(x)
    for i, bit in enumerate(abits):                # static unroll
        step = HWGQ_STEPS[bit]
        inv_step = 1.0 / step                      # reciprocal-mul, no divide
        clip_thr = step * float(2 ** bit - 1)
        g_i = gamma_ref[i]                         # SMEM scalar, hoisted once
        y = jnp.minimum(xr, clip_thr)              # HWGQ upper clamp
        lv = jnp.round(y * inv_step)               # integer quantization level
        act = act + lv * (g_i * step)              # fold gamma*step -> 1 scalar
    # values are 2/4-bit quantized -> bf16 operands lose nothing meaningful;
    # MXU runs the bf16-native fast path with f32 accumulation.
    o_ref[...] = jnp.dot(act.astype(jnp.bfloat16), w_ref[...],
                         preferred_element_type=jnp.float32)


# ---------------------------------------------------------------------------
# Glue: weight quantization / mixing (parameter-sized, plain JAX)
# ---------------------------------------------------------------------------
def _gauss_quantize(w, step, bit):
    lvls = 2.0 ** bit / 2.0
    y = (jnp.round(w / step + 0.5) - 0.5) * step
    thr = (lvls - 0.5) * step
    return jnp.clip(y, -thr, thr)


def mix_weight(weight, gamma_wt):
    # torch.Tensor.std() is unbiased (ddof=1) over all elements
    w_std = jnp.std(weight, ddof=1)
    mix = jnp.zeros_like(weight)
    for i, bit in enumerate(WBITS):
        step = GAUSS_STEPS[bit] * w_std
        mix = mix + _gauss_quantize(weight, step, bit) * gamma_wt[i]
    return mix


# ---------------------------------------------------------------------------
# Glue: im2col (pure slicing / reshape)
# ---------------------------------------------------------------------------
def _im2col(x, kH, kW, stride, padding):
    N, C, H, W = x.shape
    xp = jnp.pad(x, ((0, 0), (0, 0), (padding, padding), (padding, padding)))
    Ho = (H + 2 * padding - kH) // stride + 1
    Wo = (W + 2 * padding - kW) // stride + 1
    cols = []
    for kh in range(kH):
        for kw in range(kW):
            cols.append(xp[:, :, kh:kh + stride * Ho:stride,
                           kw:kw + stride * Wo:stride])      # (N,C,Ho,Wo)
    col = jnp.stack(cols, axis=2)                             # (N,C,kH*kW,Ho,Wo)
    col = col.transpose(0, 3, 4, 1, 2)                        # (N,Ho,Wo,C,kH*kW)
    return col.reshape(N * Ho * Wo, C * kH * kW), Ho, Wo


# ---------------------------------------------------------------------------
# Per-generation tiling / VMEM budget
# ---------------------------------------------------------------------------
def _tiles_for_device():
    kind = ""
    try:
        kind = jax.devices()[0].device_kind.lower()
    except Exception:
        pass
    if "v7" in kind:
        # 64 MiB physical VMEM: leave headroom for double-buffered pipeline.
        return 256, 256, 48 * 1024 * 1024
    if "v6" in kind:
        return 512, 256, 96 * 1024 * 1024
    if "v5e" in kind or "v5 lite" in kind or "v5lite" in kind:
        return 256, 128, 64 * 1024 * 1024
    # Conservative default (v4 / v5p / unknown / interpret).
    return 256, 128, 64 * 1024 * 1024


# ---------------------------------------------------------------------------
# MixActivConv2d forward
# ---------------------------------------------------------------------------
def mix_activ_conv2d(x, weight, gamma_act, gamma_wt, *, stride=1, padding=1,
                     tm=None, tn=None):
    N, C, H, W = x.shape
    O, Ci, kH, kW = weight.shape
    assert Ci == C

    # bookkeeping buffers from the PyTorch module (not used in the compute)
    param_size = C * O * kH * kW * 1e-6
    filter_size = param_size / float(stride ** 2.0)
    _memory_size = C * H * W * 0.001
    _size_product = filter_size * H * W
    del _memory_size, _size_product

    tm_d, tn_d, vmem_limit = _tiles_for_device()
    if tm is None:
        tm = tm_d
    if tn is None:
        tn = tn_d

    # SharedMixQuantConv2d weight mixing (glue) -> lane-dense (Kp, Op) bf16.
    K = C * kH * kW
    Kp = _round_up(K, 128)
    Op = _round_up(O, 128)
    w_mix = mix_weight(weight, gamma_wt)                      # (O,C,kH,kW)
    w_mat = w_mix.reshape(O, K).T                             # (K, O)
    w_mat = jnp.pad(w_mat, ((0, Kp - K), (0, Op - O))).astype(jnp.bfloat16)

    # im2col of the *raw* input; HWGQ is elementwise so quantizing the patches
    # inside the kernel is identical to quantizing before patch extraction
    # (zero padding quantizes to zero; padded K columns hit zero weights).
    # TODO(synk): for large memory-bound layers, decompose the conv into a sum
    # over (kh, kw) strided matmuls instead of materializing the kH*kW-times
    # larger im2col tensor in HBM.
    patches, Ho, Wo = _im2col(x, kH, kW, stride, padding)     # (M, K) f32
    M = patches.shape[0]

    tm = min(tm, _round_up(M, 8))
    tn = min(tn, Op)
    Mp = _round_up(M, tm)
    patches = jnp.pad(patches, ((0, Mp - M), (0, Kp - K)))

    grid = (Mp // tm, Op // tn)
    kernel = functools.partial(_mixconv_kernel, abits=ABITS)

    cost = pl.CostEstimate(
        flops=2 * Mp * Kp * Op,
        transcendentals=0,
        bytes_accessed=(Mp * Kp * 4) * (Op // tn)   # patches re-read per O tile
        + Kp * Op * 2                               # bf16 weight
        + Mp * Op * 4,                              # f32 output
    )

    out = pl.pallas_call(
        kernel,
        out_shape=jax.ShapeDtypeStruct((Mp, Op), jnp.float32),
        grid_spec=pltpu.PrefetchScalarGridSpec(
            num_scalar_prefetch=0,
            grid=grid,
            in_specs=[
                pl.BlockSpec(memory_space=pltpu.MemorySpace.SMEM),  # gamma_act
                pl.BlockSpec((tm, Kp), lambda i, j: (i, 0)),        # patches
                pl.BlockSpec((Kp, tn), lambda i, j: (0, j)),        # weight bf16
            ],
            out_specs=pl.BlockSpec((tm, tn), lambda i, j: (i, j)),
        ),
        compiler_params=pltpu.CompilerParams(
            dimension_semantics=("parallel", "parallel"),
            vmem_limit_bytes=vmem_limit),
        cost_estimate=cost,
    )(gamma_act, patches, w_mat)

    out = out[:M, :O].reshape(N, Ho, Wo, O).transpose(0, 3, 1, 2)  # NCHW
    return out


# ---------------------------------------------------------------------------
# Pure-JAX references (for correctness check only)
# ---------------------------------------------------------------------------
def _mix_activ_ref(x, gamma_act):
    act = jnp.zeros_like(x)
    for i, bit in enumerate(ABITS):
        step = HWGQ_STEPS[bit]
        clip_thr = step * float(2 ** bit - 1)
        y = jnp.clip(x, 0.0, clip_thr)
        y = jnp.round(y / step) * step
        act = act + y * gamma_act[i]
    return act


def _reference(x, weight, gamma_act, gamma_wt, stride=1, padding=1,
               matmul_dtype=jnp.float32):
    act = _mix_activ_ref(x, gamma_act)
    w_mix = mix_weight(weight, gamma_wt)
    return jax.lax.conv_general_dilated(
        act.astype(matmul_dtype), w_mix.astype(matmul_dtype),
        window_strides=(stride, stride),
        padding=[(padding, padding), (padding, padding)],
        dimension_numbers=("NCHW", "OIHW", "NCHW"),
        preferred_element_type=jnp.float32,
        precision=jax.lax.Precision.HIGHEST)


if __name__ == "__main__":
    key = jax.random.PRNGKey(0)
    k1, k2 = jax.random.split(key)

    N, Cin, H, W = 2, 4, 16, 16
    Cout, ksize = 8, 3
    stride, padding = 1, 1

    x = jax.random.normal(k1, (N, Cin, H, W), jnp.float32)
    # deterministic Conv2d weight (bias=False per module assert)
    weight = 0.1 * jax.random.normal(k2, (Cout, Cin, ksize, ksize), jnp.float32)
    gamma_act = jnp.array([0.3, 0.7], jnp.float32)   # softmaxed arch weights
    gamma_wt = jnp.array([0.6, 0.4], jnp.float32)

    out = mix_activ_conv2d(x, weight, gamma_act, gamma_wt,
                           stride=stride, padding=padding)
    out = jax.block_until_ready(out)
    assert out.shape == (N, Cout, H, W), out.shape

    # Tight check vs a reference that uses the same bf16 matmul operands.
    ref_bf16 = _reference(x, weight, gamma_act, gamma_wt, stride, padding,
                          matmul_dtype=jnp.bfloat16)
    err_bf16 = float(jnp.max(jnp.abs(out - ref_bf16)))
    assert err_bf16 < 5e-3, f"mismatch vs bf16-operand reference: {err_bf16}"

    # Loose check vs exact f32 module semantics (slack = bf16 operand rounding).
    ref_f32 = _reference(x, weight, gamma_act, gamma_wt, stride, padding)
    err_f32 = float(jnp.max(jnp.abs(out - ref_f32)))
    assert err_f32 < 5e-2, f"mismatch vs f32 reference: {err_f32}"

    print("KERNEL_OK")
</pallas_src>

<mosaic_0001>
module attributes {stable_mosaic.version = 11 : i64} {
  func.func @_mixconv_kernel(%arg0: i32, %arg1: i32, %arg2: memref<2xf32, #tpu.memory_space<smem>>, %arg3: memref<256x128xf32, #tpu.memory_space<vmem>>, %arg4: memref<128x128xbf16, #tpu.memory_space<vmem>>, %arg5: memref<256x128xf32, #tpu.memory_space<vmem>>) attributes {dimension_semantics = [#tpu.dimension_semantics<parallel>, #tpu.dimension_semantics<parallel>], iteration_bounds = array<i64: 2, 1>, scalar_prefetch = 0 : i64, scratch_operands = 0 : i64, tpu.core_type = #tpu.core_type<tc>, window_params = [{transform_indices = @transform_0, window_bounds = array<i64: 2>}, {transform_indices = @transform_1, window_bounds = array<i64: 256, 128>}, {transform_indices = @transform_2, window_bounds = array<i64: 128, 128>}, {transform_indices = @transform_3, window_bounds = array<i64: 256, 128>}]} {
    %c0 = arith.constant 0 : index
    %c0_0 = arith.constant 0 : index
    %0 = vector.load %arg3[%c0, %c0_0] : memref<256x128xf32, #tpu.memory_space<vmem>>, vector<256x128xf32>
    %cst = arith.constant 0.000000e+00 : f32
    %1 = vector.broadcast %cst : f32 to vector<256x128xf32>
    %2 = arith.maximumf %0, %1 : vector<256x128xf32>
    %cst_1 = arith.constant 0.000000e+00 : f32
    %3 = vector.broadcast %cst_1 : f32 to vector<256x128xf32>
    %c0_2 = arith.constant 0 : index
    %4 = memref.load %arg2[%c0_2] : memref<2xf32, #tpu.memory_space<smem>>
    %cst_3 = arith.constant 1.614000e+00 : f32
    %5 = vector.broadcast %cst_3 : f32 to vector<256x128xf32>
    %6 = arith.minimumf %2, %5 : vector<256x128xf32>
    %cst_4 = arith.constant 1.85873604 : f32
    %7 = vector.broadcast %cst_4 : f32 to vector<256x128xf32>
    %8 = arith.mulf %6, %7 : vector<256x128xf32>
    %9 = math.roundeven %8 : vector<256x128xf32>
    %cst_5 = arith.constant 5.380000e-01 : f32
    %10 = arith.mulf %4, %cst_5 : f32
    %11 = vector.broadcast %10 : f32 to vector<256x128xf32>
    %12 = arith.mulf %9, %11 : vector<256x128xf32>
    %13 = arith.addf %3, %12 : vector<256x128xf32>
    %c1 = arith.constant 1 : index
    %14 = memref.load %arg2[%c1] : memref<2xf32, #tpu.memory_space<smem>>
    %cst_6 = arith.constant 2.775000e+00 : f32
    %15 = vector.broadcast %cst_6 : f32 to vector<256x128xf32>
    %16 = arith.minimumf %2, %15 : vector<256x128xf32>
    %cst_7 = arith.constant 5.40540552 : f32
    %17 = vector.broadcast %cst_7 : f32 to vector<256x128xf32>
    %18 = arith.mulf %16, %17 : vector<256x128xf32>
    %19 = math.roundeven %18 : vector<256x128xf32>
    %cst_8 = arith.constant 1.850000e-01 : f32
    %20 = arith.mulf %14, %cst_8 : f32
    %21 = vector.broadcast %20 : f32 to vector<256x128xf32>
    %22 = arith.mulf %19, %21 : vector<256x128xf32>
    %23 = arith.addf %13, %22 : vector<256x128xf32>
    %24 = arith.truncf %23 : vector<256x128xf32> to vector<256x128xbf16>
    %c0_9 = arith.constant 0 : index
    %c0_10 = arith.constant 0 : index
    %25 = vector.load %arg4[%c0_9, %c0_10] : memref<128x128xbf16, #tpu.memory_space<vmem>>, vector<128x128xbf16>
    %cst_11 = arith.constant dense<0.000000e+00> : vector<256x128xf32>
    %26 = tpu.matmul %24, %25, %cst_11 {dimension_numbers = #tpu.dot_dimension_numbers<[1], [0], [0], [1], [0, 0, 1, 1], [], []>} : vector<256x128xbf16>, vector<128x128xbf16>, vector<256x128xf32> -> vector<256x128xf32>
    %c0_12 = arith.constant 0 : index
    %c0_13 = arith.constant 0 : index
    %27 = vector.load %arg5[%c0_12, %c0_13] : memref<256x128xf32, #tpu.memory_space<vmem>>, vector<256x128xf32>
    tpu.vector_store %arg5[%c0_12, %c0_13], %26 {strides = array<i32>} : memref<256x128xf32, #tpu.memory_space<vmem>>, vector<256x128xf32>,
    return
  }
  func.func @transform_0(%arg0: i32, %arg1: i32) -> i32 {
    %c0_i32 = arith.constant 0 : i32
    %c0_i32_0 = arith.constant 0 : i32
    return %c0_i32 : i32
  }
  func.func @transform_1(%arg0: i32, %arg1: i32) -> (i32, i32) {
    %c0_i32 = arith.constant 0 : i32
    %c0_i32_0 = arith.constant 0 : i32
    return %arg0, %c0_i32 : i32, i32
  }
  func.func @transform_2(%arg0: i32, %arg1: i32) -> (i32, i32) {
    %c0_i32 = arith.constant 0 : i32
    %c0_i32_0 = arith.constant 0 : i32
    return %c0_i32, %arg1 : i32, i32
  }
  func.func @transform_3(%arg0: i32, %arg1: i32) -> (i32, i32) {
    %c0_i32 = arith.constant 0 : i32
    return %arg0, %arg1 : i32, i32
  }
}

</mosaic_0001>

<llo_original>
// kernel: tpu_custom_call.1
$region0: #{tpu_custom_call.1}
  #allocation0 [shape = 'u32[]', space=smem, size = 0x4, offset = 0x4, fixed_abs, tag = 'smem constant byte address 0x4 - core index']
  #allocation1 [shape = 'u32[144,128]{1,0:T(1,128)}', space=vmem, size = 0x12000, scoped, tag = 'internal scratch']
  %s0 = inlined_call_operand.hbm [shape: f32[2], index: 0, kind: input, shape index: {}]
  %s1 = inlined_call_operand.hbm [shape: f32[512,128], index: 1, kind: input, shape index: {}]
  %s2 = inlined_call_operand.hbm [shape: bf16[128,128], index: 2, kind: input, shape index: {}]
  %s3 = inlined_call_operand.hbm [shape: f32[512,128], index: 3, kind: output, shape index: {}]
  %s4 = sld [smem:[#allocation0]]
  $region57: #{tpu_custom_call.1} parent=0
    _
  %s6 = ssub.s32 1, %s4
  %s7 = scalar_select 0, %s6, %s4
  $region1: #{tpu_custom_call.1} parent=0
    #allocation2 [shape = 'u8[512]{0}', space=smem, size = 0x200, scoped, tag = 'input window, operand 0, single buffered']
    #allocation3 [shape = 's32[2]{0}', space=sflag, size = 0x8, scoped, tag = 'scoped memory for tpu_custom_call.1']
    #allocation4 [shape = 's32[2]{0}', space=sflag, size = 0x8, scoped, tag = 'scoped memory for tpu_custom_call.1']
    #allocation5 [shape = 's32[2]{0}', space=sflag, size = 0x8, scoped, tag = 'scoped memory for tpu_custom_call.1']
    #allocation6 [shape = 'u8[262144]{0}', space=vmem, size = 0x40000, scoped, tag = 'input window, operand 1']
    #allocation7 [shape = 'u8[32768]{0}', space=vmem, size = 0x8000, scoped, tag = 'input window, operand 2, single buffered']
    #allocation8 [shape = 's32[1]{0}', space=sflag, size = 0x4, scoped, tag = 'scoped memory for tpu_custom_call.1']
    #allocation9 [shape = 'u8[262144]{0}', space=vmem, size = 0x40000, scoped, tag = 'output window, operand 0']
    %8 = vsyncpa [#allocation5], 0
    %9 = vsyncpa [#allocation3], 0
    %s10 = scalar_lea.sflag [#allocation3], 1
    %11 = vsyncpa %s10, 0
    %12 = vsyncpa [#allocation8], 0
    %13 = vsyncpa [#allocation4], 0
    %s14 = scalar_lea.sflag [#allocation4], 1
    %15 = vsyncpa %s14, 0
    loop: start=0, step=1, limit=4
    $region2: #{tpu_custom_call.1} parent=1 // loop_pre_header
      _
    $region3: #{tpu_custom_call.1} parent=1 // loop_header
      %s17 = sphi 0, %s21
      %p18 = scmp.ge.s32.totalorder %s17, 4
      %s24 = sphi 0, %s36
      %s25 = sphi 0, %s32
      %s26 = sphi 0, %s24
      %s27 = sphi 0, %s25
      %s28 = sphi 0, %s26
      %s29 = sphi 0, %s27
      %s37 = sphi 0, %s37
      %s39 = sphi 0, %s37
      %s40 = sphi 0, %s39
      %s54 = sphi 0, %s40
      %s60 = sphi 0, %s62
      %s63 = sphi 0, %s60
      %s64 = sphi 0, %s63
      %s80 = sphi 0, %s64
      %s86 = sphi 0, %s88
      %s89 = sphi 0, %s86
      %s90 = sphi 0, %s89
      %s106 = sphi 0, %s90
      %s114 = sphi 0, %s116
      %s117 = sphi 0, %s114
      %s118 = sphi 0, %s117
      %s134 = sphi 0, %s118
    $region4: #{tpu_custom_call.1} parent=1 // loop_header_branch
      %20 = sbr.rel (%p18) target = $region8
    $region5: #{tpu_custom_call.1} parent=1 // loop_body
      %s22 = ssub.s32 %s17, 1
      %s23 = ssub.s32 %s17, 2
      %s30 = sadd.s32 1, %s25
      %p31 = scmp.ge.s32.totalorder %s30, 1
      %s32 = scalar_select %p31, 0, %s30
      %s33 = sadd.s32 1, %s24
      %s34 = scalar_select %p31, %s33, %s24
      %p35 = scmp.ge.s32.totalorder %s34, 2
      %s36 = scalar_select %p35, 0, %s34
      %s38 = sadd.s32 %s37, 1
      %p41 = scmp.eq.s32.totalorder %s17, 1
      %p42 = scmp.ne.s32.totalorder %s37, %s39
      %p43 = scmp.eq.s32.totalorder %s17, 0
      %p44 = por %p42, %p43
      %p45 = scmp.ne.s32.totalorder %s37, %s39
      %p46 = scmp.eq.s32.totalorder %s22, 1
      %p47 = por %p45, %p46
      %p48 = scmp.ne.s32.totalorder %s39, %s40
      %p49 = scmp.eq.s32.totalorder %s22, 0
      %p50 = por %p48, %p49
      %p51 = scmp.ne.s32.totalorder %s39, %s40
      %p52 = scmp.eq.s32.totalorder %s23, 1
      %p53 = por %p51, %p52
      %p55 = scmp.ne.s32.totalorder %s40, %s54
      %p56 = scmp.eq.s32.totalorder %s23, 0
      %p57 = por %p55, %p56
      %s58 = ssub.s32 %s24, %s36
      %p59 = scmp.eq.s32.totalorder %s58, 0
      %s61 = sadd.s32 %s60, 1
      %s62 = scalar_select %p59, %s60, %s61
      %p65 = pneg %p59
      %p66 = scmp.eq.s32.totalorder %s17, 1
      %p67 = por %p65, %p66
      %p68 = scmp.ne.s32.totalorder %s60, %s63
      %p69 = scmp.eq.s32.totalorder %s17, 0
      %p70 = por %p68, %p69
      %p71 = scmp.ne.s32.totalorder %s60, %s63
      %p72 = scmp.eq.s32.totalorder %s22, 1
      %p73 = por %p71, %p72
      %p74 = scmp.ne.s32.totalorder %s63, %s64
      %p75 = scmp.eq.s32.totalorder %s22, 0
      %p76 = por %p74, %p75
      %p77 = scmp.ne.s32.totalorder %s63, %s64
      %p78 = scmp.eq.s32.totalorder %s23, 1
      %p79 = por %p77, %p78
      %p81 = scmp.ne.s32.totalorder %s64, %s80
      %p82 = scmp.eq.s32.totalorder %s23, 0
      %p83 = por %p81, %p82
      %s84 = ssub.s32 %s25, %s32
      %p85 = scmp.eq.s32.totalorder %s84, 0
      %s87 = sadd.s32 %s86, 1
      %s88 = scalar_select %p85, %s86, %s87
      %p91 = pneg %p85
      %p92 = scmp.eq.s32.totalorder %s17, 1
      %p93 = por %p91, %p92
      %p94 = scmp.ne.s32.totalorder %s86, %s89
      %p95 = scmp.eq.s32.totalorder %s17, 0
      %p96 = por %p94, %p95
      %p97 = scmp.ne.s32.totalorder %s86, %s89
      %p98 = scmp.eq.s32.totalorder %s22, 1
      %p99 = por %p97, %p98
      %p100 = scmp.ne.s32.totalorder %s89, %s90
      %p101 = scmp.eq.s32.totalorder %s22, 0
      %p102 = por %p100, %p101
      %p103 = scmp.ne.s32.totalorder %s89, %s90
      %p104 = scmp.eq.s32.totalorder %s23, 1
      %p105 = por %p103, %p104
      %p107 = scmp.ne.s32.totalorder %s90, %s106
      %p108 = scmp.eq.s32.totalorder %s23, 0
      %p109 = por %p107, %p108
      %s110 = ssub.s32 %s24, %s36
      %s111 = ssub.s32 %s25, %s32
      %s112 = sor.u32 %s110, %s111
      %p113 = scmp.eq.s32.totalorder %s112, 0
      %s115 = sadd.s32 %s114, 1
      %s116 = scalar_select %p113, %s114, %s115
      %p119 = pneg %p113
      %p120 = scmp.eq.s32.totalorder %s17, 1
      %p121 = por %p119, %p120
      %p122 = scmp.ne.s32.totalorder %s114, %s117
      %p123 = scmp.eq.s32.totalorder %s17, 0
      %p124 = por %p122, %p123
      %p125 = scmp.ne.s32.totalorder %s114, %s117
      %p126 = scmp.eq.s32.totalorder %s22, 1
      %p127 = por %p125, %p126
      %p128 = scmp.ne.s32.totalorder %s117, %s118
      %p129 = scmp.eq.s32.totalorder %s22, 0
      %p130 = por %p128, %p129
      %p131 = scmp.ne.s32.totalorder %s117, %s118
      %p132 = scmp.eq.s32.totalorder %s23, 1
      %p133 = por %p131, %p132
      %p135 = scmp.ne.s32.totalorder %s118, %s134
      %p136 = scmp.eq.s32.totalorder %s23, 0
      %p137 = por %p135, %p136
      %p138 = scmp.le.s32.totalorder 1, %s17
      %p139 = scmp.lt.s32.totalorder %s17, 3
      %p140 = pnand %p138, %p139
      %p141 = pneg %p140
      // Predicated region
      $region9: #{tpu_custom_call.1} parent=5 // pred_check
        _
      $region10: #{tpu_custom_call.1} parent=5 // pred_check_branch
        %143 = sbr.rel (%p140) target = $region12
      $region11: #{tpu_custom_call.1} parent=5 // pred_region
        %s144 = ssub.s32 %s17, 1
        // Predicated region
        $region13: #{tpu_custom_call.1} parent=11 // pred_check
          %p145 = pneg %p50
        $region14: #{tpu_custom_call.1} parent=11 // pred_check_branch
          %147 = sbr.rel (%p145) target = $region16
        $region15: #{tpu_custom_call.1} parent=11 // pred_region
          %s149 = ssub.s32 16, 16
          %150 = vsyncadd [#allocation5], %s149
          %153 = dma.hbm_to_smem %s0, 16, [#allocation2], [#allocation5]
        $region16: #{tpu_custom_call.1} parent=11 // pred_fallthru
          _
        // Predicated region
        $region17: #{tpu_custom_call.1} parent=11 // pred_check
          %p154 = pneg %p102
        $region18: #{tpu_custom_call.1} parent=11 // pred_check_branch
          %156 = sbr.rel (%p154) target = $region20
        $region19: #{tpu_custom_call.1} parent=11 // pred_region
          %s158 = ssub.s32 1024, 1024
          %159 = vsyncadd [#allocation8], %s158
          %s160 = smul.addr %s27, 64
          %s161 = scalar_lea.hbm %s2, %s160
          %s162 = sshll.u32 [#allocation7], 4
          %s163 = int_to_ptr.vmem [resolvable:$true] %s162
          %168 = dma.hbm_to_vmem [thread:$0]  %s161, 1024, %s163, [#allocation8], 64, 64, 4
        $region20: #{tpu_custom_call.1} parent=11 // pred_fallthru
          _
      $region12: #{tpu_custom_call.1} parent=5 // pred_fallthru
        _
      %p169 = scmp.lt.s32.totalorder %s17, 2
      // Predicated region
      $region21: #{tpu_custom_call.1} parent=5 // pred_check
        %p170 = pneg %p169
      $region22: #{tpu_custom_call.1} parent=5 // pred_check_branch
        %172 = sbr.rel (%p170) target = $region24
      $region23: #{tpu_custom_call.1} parent=5 // pred_region
        // Predicated region
        $region25: #{tpu_custom_call.1} parent=23 // pred_check
          %p173 = pneg %p70
        $region26: #{tpu_custom_call.1} parent=23 // pred_check_branch
          %175 = sbr.rel (%p173) target = $region28
        $region27: #{tpu_custom_call.1} parent=23 // pred_region
          %s176 = sand.u32 %s60, 1
          %s177 = scalar_lea.sflag [#allocation3], %s176
          %s178 = sand.u32 %s60, 1
          %s179 = smul.addr %s178, 256
          %s180 = scalar_lea.vmem [#allocation6], %s179
          %s181 = smul.u32 32, %s24
          %s183 = ssub.s32 4096, 4096
          %184 = vsyncadd %s177, %s183
          %s185 = smul.addr %s181, 128
          %s186 = scalar_lea.hbm %s1, %s185
          %s187 = sshll.u32 %s180, 4
          %s188 = int_to_ptr.vmem [resolvable:$true] %s187
          %193 = dma.hbm_to_vmem [thread:$0]  %s186, 4096, %s188, %s177, 128, 128, 8
        $region28: #{tpu_custom_call.1} parent=23 // pred_fallthru
          _
      $region24: #{tpu_custom_call.1} parent=5 // pred_fallthru
        _
      %p194 = scmp.le.s32.totalorder 1, %s17
      %p195 = scmp.lt.s32.totalorder %s17, 3
      %p196 = pnand %p194, %p195
      %p197 = pneg %p196
      // Predicated region
      $region29: #{tpu_custom_call.1} parent=5 // pred_check
        _
      $region30: #{tpu_custom_call.1} parent=5 // pred_check_branch
        %199 = sbr.rel (%p196) target = $region32
      $region31: #{tpu_custom_call.1} parent=5 // pred_region
        %s200 = ssub.s32 %s17, 1
        // Predicated region
        $region33: #{tpu_custom_call.1} parent=31 // pred_check
          %p201 = pneg %p50
        $region34: #{tpu_custom_call.1} parent=31 // pred_check_branch
          %203 = sbr.rel (%p201) target = $region36
        $region35: #{tpu_custom_call.1} parent=31 // pred_region
          %204 = dma.done [#allocation5], 16
        $region36: #{tpu_custom_call.1} parent=31 // pred_fallthru
          _
        %s205 = sand.u32 %s63, 1
        %s206 = scalar_lea.sflag [#allocation3], %s205
        %s207 = sand.u32 %s63, 1
        %s208 = smul.addr %s207, 256
        %s209 = scalar_lea.vmem [#allocation6], %s208
        // Predicated region
        $region37: #{tpu_custom_call.1} parent=31 // pred_check
          %p210 = pneg %p76
        $region38: #{tpu_custom_call.1} parent=31 // pred_check_branch
          %212 = sbr.rel (%p210) target = $region40
        $region39: #{tpu_custom_call.1} parent=31 // pred_region
          %213 = dma.done %s206, 4096
        $region40: #{tpu_custom_call.1} parent=31 // pred_fallthru
          _
        // Predicated region
        $region41: #{tpu_custom_call.1} parent=31 // pred_check
          %p214 = pneg %p102
        $region42: #{tpu_custom_call.1} parent=31 // pred_check_branch
          %216 = sbr.rel (%p214) target = $region44
        $region43: #{tpu_custom_call.1} parent=31 // pred_region
          %217 = dma.done [#allocation8], 1024
        $region44: #{tpu_custom_call.1} parent=31 // pred_fallthru
          _
        %218 = sfence
        %p219 = pneg %p50
        %p220 = pneg %p47
        %s221 = sand.u32 %s63, 1
        %s222 = scalar_lea.sflag [#allocation3], %s221
        %s223 = sand.u32 %s63, 1
        %s224 = smul.addr %s223, 256
        %s225 = scalar_lea.vmem [#allocation6], %s224
        %p226 = pneg %p76
        %p227 = pneg %p73
        %p228 = pneg %p102
        %p229 = pneg %p99
        %p230 = pneg %p130
        %p231 = pneg %p127
        %s232 = sand.u32 %s117, 1
        %s233 = scalar_lea.sflag [#allocation4], %s232
        %s234 = sand.u32 %s117, 1
        %s235 = smul.addr %s234, 256
        %s236 = scalar_lea.vmem [#allocation9], %s235
        %s237 = smul.u32 32, %s26
        %s238 = smul.u32 32, %s26
        %v240 = vld [vmem:[%s209] sm:$0xff]
        %v241 = vld [vmem:[%s209 + $0x8] sm:$0xff]
        %v242 = vld [vmem:[%s209 + $0x10] sm:$0xff]
        %v243 = vld [vmem:[%s209 + $0x18] sm:$0xff]
        %v244 = vld [vmem:[%s209 + $0x20] sm:$0xff]
        %v245 = vld [vmem:[%s209 + $0x28] sm:$0xff]
        %v246 = vld [vmem:[%s209 + $0x30] sm:$0xff]
        %v247 = vld [vmem:[%s209 + $0x38] sm:$0xff]
        %v248 = vld [vmem:[%s209 + $0x40] sm:$0xff]
        %v249 = vld [vmem:[%s209 + $0x48] sm:$0xff]
        %v250 = vld [vmem:[%s209 + $0x50] sm:$0xff]
        %v251 = vld [vmem:[%s209 + $0x58] sm:$0xff]
        %v252 = vld [vmem:[%s209 + $0x60] sm:$0xff]
        %v253 = vld [vmem:[%s209 + $0x68] sm:$0xff]
        %v254 = vld [vmem:[%s209 + $0x70] sm:$0xff]
        %v255 = vld [vmem:[%s209 + $0x78] sm:$0xff]
        %v256 = vld [vmem:[%s209 + $0x80] sm:$0xff]
        %v257 = vld [vmem:[%s209 + $0x88] sm:$0xff]
        %v258 = vld [vmem:[%s209 + $0x90] sm:$0xff]
        %v259 = vld [vmem:[%s209 + $0x98] sm:$0xff]
        %v260 = vld [vmem:[%s209 + $0xa0] sm:$0xff]
        %v261 = vld [vmem:[%s209 + $0xa8] sm:$0xff]
        %v262 = vld [vmem:[%s209 + $0xb0] sm:$0xff]
        %v263 = vld [vmem:[%s209 + $0xb8] sm:$0xff]
        %v264 = vld [vmem:[%s209 + $0xc0] sm:$0xff]
        %v265 = vld [vmem:[%s209 + $0xc8] sm:$0xff]
        %v266 = vld [vmem:[%s209 + $0xd0] sm:$0xff]
        %v267 = vld [vmem:[%s209 + $0xd8] sm:$0xff]
        %v268 = vld [vmem:[%s209 + $0xe0] sm:$0xff]
        %v269 = vld [vmem:[%s209 + $0xe8] sm:$0xff]
        %v270 = vld [vmem:[%s209 + $0xf0] sm:$0xff]
        %v271 = vld [vmem:[%s209 + $0xf8] sm:$0xff]
        %v272 = vmax.f32 %v240, 0.0
        %v273 = vmax.f32 %v241, 0.0
        %v274 = vmax.f32 %v242, 0.0
        %v275 = vmax.f32 %v243, 0.0
        %v276 = vmax.f32 %v244, 0.0
        %v277 = vmax.f32 %v245, 0.0
        %v278 = vmax.f32 %v246, 0.0
        %v279 = vmax.f32 %v247, 0.0
        %v280 = vmax.f32 %v248, 0.0
        %v281 = vmax.f32 %v249, 0.0
        %v282 = vmax.f32 %v250, 0.0
        %v283 = vmax.f32 %v251, 0.0
        %v284 = vmax.f32 %v252, 0.0
        %v285 = vmax.f32 %v253, 0.0
        %v286 = vmax.f32 %v254, 0.0
        %v287 = vmax.f32 %v255, 0.0
        %v288 = vmax.f32 %v256, 0.0
        %v289 = vmax.f32 %v257, 0.0
        %v290 = vmax.f32 %v258, 0.0
        %v291 = vmax.f32 %v259, 0.0
        %v292 = vmax.f32 %v260, 0.0
        %v293 = vmax.f32 %v261, 0.0
        %v294 = vmax.f32 %v262, 0.0
        %v295 = vmax.f32 %v263, 0.0
        %v296 = vmax.f32 %v264, 0.0
        %v297 = vmax.f32 %v265, 0.0
        %v298 = vmax.f32 %v266, 0.0
        %v299 = vmax.f32 %v267, 0.0
        %v300 = vmax.f32 %v268, 0.0
        %v301 = vmax.f32 %v269, 0.0
        %v302 = vmax.f32 %v270, 0.0
        %v303 = vmax.f32 %v271, 0.0
        %s304 = sld [smem:[#allocation2]]
        %v305 = vmin.f32 %v272, 1.614
        %v306 = vmin.f32 %v273, 1.614
        %v307 = vmin.f32 %v274, 1.614
        %v308 = vmin.f32 %v275, 1.614
        %v309 = vmin.f32 %v276, 1.614
        %v310 = vmin.f32 %v277, 1.614
        %v311 = vmin.f32 %v278, 1.614
        %v312 = vmin.f32 %v279, 1.614
        %v313 = vmin.f32 %v280, 1.614
        %v314 = vmin.f32 %v281, 1.614
        %v315 = vmin.f32 %v282, 1.614
        %v316 = vmin.f32 %v283, 1.614
        %v317 = vmin.f32 %v284, 1.614
        %v318 = vmin.f32 %v285, 1.614
        %v319 = vmin.f32 %v286, 1.614
        %v320 = vmin.f32 %v287, 1.614
        %v321 = vmin.f32 %v288, 1.614
        %v322 = vmin.f32 %v289, 1.614
        %v323 = vmin.f32 %v290, 1.614
        %v324 = vmin.f32 %v291, 1.614
        %v325 = vmin.f32 %v292, 1.614
        %v326 = vmin.f32 %v293, 1.614
        %v327 = vmin.f32 %v294, 1.614
        %v328 = vmin.f32 %v295, 1.614
        %v329 = vmin.f32 %v296, 1.614
        %v330 = vmin.f32 %v297, 1.614
        %v331 = vmin.f32 %v298, 1.614
        %v332 = vmin.f32 %v299, 1.614
        %v333 = vmin.f32 %v300, 1.614
        %v334 = vmin.f32 %v301, 1.614
        %v335 = vmin.f32 %v302, 1.614
        %v336 = vmin.f32 %v303, 1.614
        %v337 = vmul.f32 %v305, 1.858736
        %v338 = vmul.f32 %v306, 1.858736
        %v339 = vmul.f32 %v307, 1.858736
        %v340 = vmul.f32 %v308, 1.858736
        %v341 = vmul.f32 %v309, 1.858736
        %v342 = vmul.f32 %v310, 1.858736
        %v343 = vmul.f32 %v311, 1.858736
        %v344 = vmul.f32 %v312, 1.858736
        %v345 = vmul.f32 %v313, 1.858736
        %v346 = vmul.f32 %v314, 1.858736
        %v347 = vmul.f32 %v315, 1.858736
        %v348 = vmul.f32 %v316, 1.858736
        %v349 = vmul.f32 %v317, 1.858736
        %v350 = vmul.f32 %v318, 1.858736
        %v351 = vmul.f32 %v319, 1.858736
        %v352 = vmul.f32 %v320, 1.858736
        %v353 = vmul.f32 %v321, 1.858736
        %v354 = vmul.f32 %v322, 1.858736
        %v355 = vmul.f32 %v323, 1.858736
        %v356 = vmul.f32 %v324, 1.858736
        %v357 = vmul.f32 %v325, 1.858736
        %v358 = vmul.f32 %v326, 1.858736
        %v359 = vmul.f32 %v327, 1.858736
        %v360 = vmul.f32 %v328, 1.858736
        %v361 = vmul.f32 %v329, 1.858736
        %v362 = vmul.f32 %v330, 1.858736
        %v363 = vmul.f32 %v331, 1.858736
        %v364 = vmul.f32 %v332, 1.858736
        %v365 = vmul.f32 %v333, 1.858736
        %v366 = vmul.f32 %v334, 1.858736
        %v367 = vmul.f32 %v335, 1.858736
        %v368 = vmul.f32 %v336, 1.858736
        %v369 = vround.ne.pseudo %v337
        %v370 = vround.ne.pseudo %v338
        %v371 = vround.ne.pseudo %v339
        %v372 = vround.ne.pseudo %v340
        %v373 = vround.ne.pseudo %v341
        %v374 = vround.ne.pseudo %v342
        %v375 = vround.ne.pseudo %v343
        %v376 = vround.ne.pseudo %v344
        %v377 = vround.ne.pseudo %v345
        %v378 = vround.ne.pseudo %v346
        %v379 = vround.ne.pseudo %v347
        %v380 = vround.ne.pseudo %v348
        %v381 = vround.ne.pseudo %v349
        %v382 = vround.ne.pseudo %v350
        %v383 = vround.ne.pseudo %v351
        %v384 = vround.ne.pseudo %v352
        %v385 = vround.ne.pseudo %v353
        %v386 = vround.ne.pseudo %v354
        %v387 = vround.ne.pseudo %v355
        %v388 = vround.ne.pseudo %v356
        %v389 = vround.ne.pseudo %v357
        %v390 = vround.ne.pseudo %v358
        %v391 = vround.ne.pseudo %v359
        %v392 = vround.ne.pseudo %v360
        %v393 = vround.ne.pseudo %v361
        %v394 = vround.ne.pseudo %v362
        %v395 = vround.ne.pseudo %v363
        %v396 = vround.ne.pseudo %v364
        %v397 = vround.ne.pseudo %v365
        %v398 = vround.ne.pseudo %v366
        %v399 = vround.ne.pseudo %v367
        %v400 = vround.ne.pseudo %v368
        %s401 = smul.f32 %s304, 0.538
        %v402 = vstv %s401
        %v403 = vmul.f32 %v369, %v402
        %v404 = vmul.f32 %v370, %v402
        %v405 = vmul.f32 %v371, %v402
        %v406 = vmul.f32 %v372, %v402
        %v407 = vmul.f32 %v373, %v402
        %v408 = vmul.f32 %v374, %v402
        %v409 = vmul.f32 %v375, %v402
        %v410 = vmul.f32 %v376, %v402
        %v411 = vmul.f32 %v377, %v402
        %v412 = vmul.f32 %v378, %v402
        %v413 = vmul.f32 %v379, %v402
        %v414 = vmul.f32 %v380, %v402
        %v415 = vmul.f32 %v381, %v402
        %v416 = vmul.f32 %v382, %v402
        %v417 = vmul.f32 %v383, %v402
        %v418 = vmul.f32 %v384, %v402
        %v419 = vmul.f32 %v385, %v402
        %v420 = vmul.f32 %v386, %v402
        %v421 = vmul.f32 %v387, %v402
        %v422 = vmul.f32 %v388, %v402
        %v423 = vmul.f32 %v389, %v402
        %v424 = vmul.f32 %v390, %v402
        %v425 = vmul.f32 %v391, %v402
        %v426 = vmul.f32 %v392, %v402
        %v427 = vmul.f32 %v393, %v402
        %v428 = vmul.f32 %v394, %v402
        %v429 = vmul.f32 %v395, %v402
        %v430 = vmul.f32 %v396, %v402
        %v431 = vmul.f32 %v397, %v402
        %v432 = vmul.f32 %v398, %v402
        %v433 = vmul.f32 %v399, %v402
        %v434 = vmul.f32 %v400, %v402
        %v435 = vadd.f32 %v403, 0.0
        %v436 = vadd.f32 %v404, 0.0
        %v437 = vadd.f32 %v405, 0.0
        %v438 = vadd.f32 %v406, 0.0
        %v439 = vadd.f32 %v407, 0.0
        %v440 = vadd.f32 %v408, 0.0
        %v441 = vadd.f32 %v409, 0.0
        %v442 = vadd.f32 %v410, 0.0
        %v443 = vadd.f32 %v411, 0.0
        %v444 = vadd.f32 %v412, 0.0
        %v445 = vadd.f32 %v413, 0.0
        %v446 = vadd.f32 %v414, 0.0
        %v447 = vadd.f32 %v415, 0.0
        %v448 = vadd.f32 %v416, 0.0
        %v449 = vadd.f32 %v417, 0.0
        %v450 = vadd.f32 %v418, 0.0
        %v451 = vadd.f32 %v419, 0.0
        %v452 = vadd.f32 %v420, 0.0
        %v453 = vadd.f32 %v421, 0.0
        %v454 = vadd.f32 %v422, 0.0
        %v455 = vadd.f32 %v423, 0.0
        %v456 = vadd.f32 %v424, 0.0
        %v457 = vadd.f32 %v425, 0.0
        %v458 = vadd.f32 %v426, 0.0
        %v459 = vadd.f32 %v427, 0.0
        %v460 = vadd.f32 %v428, 0.0
        %v461 = vadd.f32 %v429, 0.0
        %v462 = vadd.f32 %v430, 0.0
        %v463 = vadd.f32 %v431, 0.0
        %v464 = vadd.f32 %v432, 0.0
        %v465 = vadd.f32 %v433, 0.0
        %v466 = vadd.f32 %v434, 0.0
        %s467 = sld [smem:[#allocation2 + $0x1]]
        %v468 = vmin.f32 %v272, 2.775
        %v469 = vmin.f32 %v273, 2.775
        %v470 = vmin.f32 %v274, 2.775
        %v471 = vmin.f32 %v275, 2.775
        %v472 = vmin.f32 %v276, 2.775
        %v473 = vmin.f32 %v277, 2.775
        %v474 = vmin.f32 %v278, 2.775
        %v475 = vmin.f32 %v279, 2.775
        %v476 = vmin.f32 %v280, 2.775
        %v477 = vmin.f32 %v281, 2.775
        %v478 = vmin.f32 %v282, 2.775
        %v479 = vmin.f32 %v283, 2.775
        %v480 = vmin.f32 %v284, 2.775
        %v481 = vmin.f32 %v285, 2.775
        %v482 = vmin.f32 %v286, 2.775
        %v483 = vmin.f32 %v287, 2.775
        %v484 = vmin.f32 %v288, 2.775
        %v485 = vmin.f32 %v289, 2.775
        %v486 = vmin.f32 %v290, 2.775
        %v487 = vmin.f32 %v291, 2.775
        %v488 = vmin.f32 %v292, 2.775
        %v489 = vmin.f32 %v293, 2.775
        %v490 = vmin.f32 %v294, 2.775
        %v491 = vmin.f32 %v295, 2.775
        %v492 = vmin.f32 %v296, 2.775
        %v493 = vmin.f32 %v297, 2.775
        %v494 = vmin.f32 %v298, 2.775
        %v495 = vmin.f32 %v299, 2.775
        %v496 = vmin.f32 %v300, 2.775
        %v497 = vmin.f32 %v301, 2.775
        %v498 = vmin.f32 %v302, 2.775
        %v499 = vmin.f32 %v303, 2.775
        %v500 = vmul.f32 %v468, 5.4054055
        %v501 = vmul.f32 %v469, 5.4054055
        %v502 = vmul.f32 %v470, 5.4054055
        %v503 = vmul.f32 %v471, 5.4054055
        %v504 = vmul.f32 %v472, 5.4054055
        %v505 = vmul.f32 %v473, 5.4054055
        %v506 = vmul.f32 %v474, 5.4054055
        %v507 = vmul.f32 %v475, 5.4054055
        %v508 = vmul.f32 %v476, 5.4054055
        %v509 = vmul.f32 %v477, 5.4054055
        %v510 = vmul.f32 %v478, 5.4054055
        %v511 = vmul.f32 %v479, 5.4054055
        %v512 = vmul.f32 %v480, 5.4054055
        %v513 = vmul.f32 %v481, 5.4054055
        %v514 = vmul.f32 %v482, 5.4054055
        %v515 = vmul.f32 %v483, 5.4054055
        %v516 = vmul.f32 %v484, 5.4054055
        %v517 = vmul.f32 %v485, 5.4054055
        %v518 = vmul.f32 %v486, 5.4054055
        %v519 = vmul.f32 %v487, 5.4054055
        %v520 = vmul.f32 %v488, 5.4054055
        %v521 = vmul.f32 %v489, 5.4054055
        %v522 = vmul.f32 %v490, 5.4054055
        %v523 = vmul.f32 %v491, 5.4054055
        %v524 = vmul.f32 %v492, 5.4054055
        %v525 = vmul.f32 %v493, 5.4054055
        %v526 = vmul.f32 %v494, 5.4054055
        %v527 = vmul.f32 %v495, 5.4054055
        %v528 = vmul.f32 %v496, 5.4054055
        %v529 = vmul.f32 %v497, 5.4054055
        %v530 = vmul.f32 %v498, 5.4054055
        %v531 = vmul.f32 %v499, 5.4054055
        %v532 = vround.ne.pseudo %v500
        %v533 = vround.ne.pseudo %v501
        %v534 = vround.ne.pseudo %v502
        %v535 = vround.ne.pseudo %v503
        %v536 = vround.ne.pseudo %v504
        %v537 = vround.ne.pseudo %v505
        %v538 = vround.ne.pseudo %v506
        %v539 = vround.ne.pseudo %v507
        %v540 = vround.ne.pseudo %v508
        %v541 = vround.ne.pseudo %v509
        %v542 = vround.ne.pseudo %v510
        %v543 = vround.ne.pseudo %v511
        %v544 = vround.ne.pseudo %v512
        %v545 = vround.ne.pseudo %v513
        %v546 = vround.ne.pseudo %v514
        %v547 = vround.ne.pseudo %v515
        %v548 = vround.ne.pseudo %v516
        %v549 = vround.ne.pseudo %v517
        %v550 = vround.ne.pseudo %v518
        %v551 = vround.ne.pseudo %v519
        %v552 = vround.ne.pseudo %v520
        %v553 = vround.ne.pseudo %v521
        %v554 = vround.ne.pseudo %v522
        %v555 = vround.ne.pseudo %v523
        %v556 = vround.ne.pseudo %v524
        %v557 = vround.ne.pseudo %v525
        %v558 = vround.ne.pseudo %v526
        %v559 = vround.ne.pseudo %v527
        %v560 = vround.ne.pseudo %v528
        %v561 = vround.ne.pseudo %v529
        %v562 = vround.ne.pseudo %v530
        %v563 = vround.ne.pseudo %v531
        %s564 = smul.f32 %s467, 0.185
        %v565 = vstv %s564
        %v566 = vmul.f32 %v532, %v565
        %v567 = vmul.f32 %v533, %v565
        %v568 = vmul.f32 %v534, %v565
        %v569 = vmul.f32 %v535, %v565
        %v570 = vmul.f32 %v536, %v565
        %v571 = vmul.f32 %v537, %v565
        %v572 = vmul.f32 %v538, %v565
        %v573 = vmul.f32 %v539, %v565
        %v574 = vmul.f32 %v540, %v565
        %v575 = vmul.f32 %v541, %v565
        %v576 = vmul.f32 %v542, %v565
        %v577 = vmul.f32 %v543, %v565
        %v578 = vmul.f32 %v544, %v565
        %v579 = vmul.f32 %v545, %v565
        %v580 = vmul.f32 %v546, %v565
        %v581 = vmul.f32 %v547, %v565
        %v582 = vmul.f32 %v548, %v565
        %v583 = vmul.f32 %v549, %v565
        %v584 = vmul.f32 %v550, %v565
        %v585 = vmul.f32 %v551, %v565
        %v586 = vmul.f32 %v552, %v565
        %v587 = vmul.f32 %v553, %v565
        %v588 = vmul.f32 %v554, %v565
        %v589 = vmul.f32 %v555, %v565
        %v590 = vmul.f32 %v556, %v565
        %v591 = vmul.f32 %v557, %v565
        %v592 = vmul.f32 %v558, %v565
        %v593 = vmul.f32 %v559, %v565
        %v594 = vmul.f32 %v560, %v565
        %v595 = vmul.f32 %v561, %v565
        %v596 = vmul.f32 %v562, %v565
        %v597 = vmul.f32 %v563, %v565
        %v598 = vadd.f32 %v435, %v566
        %v599 = vadd.f32 %v436, %v567
        %v600 = vadd.f32 %v437, %v568
        %v601 = vadd.f32 %v438, %v569
        %v602 = vadd.f32 %v439, %v570
        %v603 = vadd.f32 %v440, %v571
        %v604 = vadd.f32 %v441, %v572
        %v605 = vadd.f32 %v442, %v573
        %v606 = vadd.f32 %v443, %v574
        %v607 = vadd.f32 %v444, %v575
        %v608 = vadd.f32 %v445, %v576
        %v609 = vadd.f32 %v446, %v577
        %v610 = vadd.f32 %v447, %v578
        %v611 = vadd.f32 %v448, %v579
        %v612 = vadd.f32 %v449, %v580
        %v613 = vadd.f32 %v450, %v581
        %v614 = vadd.f32 %v451, %v582
        %v615 = vadd.f32 %v452, %v583
        %v616 = vadd.f32 %v453, %v584
        %v617 = vadd.f32 %v454, %v585
        %v618 = vadd.f32 %v455, %v586
        %v619 = vadd.f32 %v456, %v587
        %v620 = vadd.f32 %v457, %v588
        %v621 = vadd.f32 %v458, %v589
        %v622 = vadd.f32 %v459, %v590
        %v623 = vadd.f32 %v460, %v591
        %v624 = vadd.f32 %v461, %v592
        %v625 = vadd.f32 %v462, %v593
        %v626 = vadd.f32 %v463, %v594
        %v627 = vadd.f32 %v464, %v595
        %v628 = vadd.f32 %v465, %v596
        %v629 = vadd.f32 %v466, %v597
        %v630 = vpack.c.bf16 %v599, %v598
        %v631 = vpack.c.bf16 %v601, %v600
        %v632 = vpack.c.bf16 %v603, %v602
        %v633 = vpack.c.bf16 %v605, %v604
        %v634 = vpack.c.bf16 %v607, %v606
        %v635 = vpack.c.bf16 %v609, %v608
        %v636 = vpack.c.bf16 %v611, %v610
        %v637 = vpack.c.bf16 %v613, %v612
        %v638 = vpack.c.bf16 %v615, %v614
        %v639 = vpack.c.bf16 %v617, %v616
        %v640 = vpack.c.bf16 %v619, %v618
        %v641 = vpack.c.bf16 %v621, %v620
        %v642 = vpack.c.bf16 %v623, %v622
        %v643 = vpack.c.bf16 %v625, %v624
        %v644 = vpack.c.bf16 %v627, %v626
        %v645 = vpack.c.bf16 %v629, %v628
        %v646 = vld [vmem:[#allocation7] sm:$0xf]
        %v647 = vld [vmem:[#allocation7 + $0x4] sm:$0xf]
        %v648 = vld [vmem:[#allocation7 + $0x8] sm:$0xf]
        %v649 = vld [vmem:[#allocation7 + $0xc] sm:$0xf]
        %v650 = vld [vmem:[#allocation7 + $0x10] sm:$0xf]
        %v651 = vld [vmem:[#allocation7 + $0x14] sm:$0xf]
        %v652 = vld [vmem:[#allocation7 + $0x18] sm:$0xf]
        %v653 = vld [vmem:[#allocation7 + $0x1c] sm:$0xf]
        %v654 = vld [vmem:[#allocation7 + $0x20] sm:$0xf]
        %v655 = vld [vmem:[#allocation7 + $0x24] sm:$0xf]
        %v656 = vld [vmem:[#allocation7 + $0x28] sm:$0xf]
        %v657 = vld [vmem:[#allocation7 + $0x2c] sm:$0xf]
        %v658 = vld [vmem:[#allocation7 + $0x30] sm:$0xf]
        %v659 = vld [vmem:[#allocation7 + $0x34] sm:$0xf]
        %v660 = vld [vmem:[#allocation7 + $0x38] sm:$0xf]
        %v661 = vld [vmem:[#allocation7 + $0x3c] sm:$0xf]
        %v678 = vunpack.c.l.b16 %v646
        %v679 = vunpack.c.l.b16 %v647
        %v680 = vunpack.c.l.b16 %v648
        %v681 = vunpack.c.l.b16 %v649
        %v682 = vunpack.c.l.b16 %v650
        %v683 = vunpack.c.l.b16 %v651
        %v684 = vunpack.c.l.b16 %v652
        %v685 = vunpack.c.l.b16 %v653
        %v686 = vunpack.c.l.b16 %v654
        %v687 = vunpack.c.l.b16 %v655
        %v688 = vunpack.c.l.b16 %v656
        %v689 = vunpack.c.l.b16 %v657
        %v690 = vunpack.c.l.b16 %v658
        %v691 = vunpack.c.l.b16 %v659
        %v692 = vunpack.c.l.b16 %v660
        %v693 = vunpack.c.l.b16 %v661
        %v694 = vpack.c.b16 %v679, %v678
        %v695 = vpack.c.b16 %v681, %v680
        %v696 = vpack.c.b16 %v683, %v682
        %v697 = vpack.c.b16 %v685, %v684
        %v698 = vpack.c.b16 %v687, %v686
        %v699 = vpack.c.b16 %v689, %v688
        %v700 = vpack.c.b16 %v691, %v690
        %v701 = vpack.c.b16 %v693, %v692
        %710 = vmatprep.subr.bf16.mxu0 0
        %711 = vmatpush1.bf16.msra.mxu0 %v694
        %712 = vmatprep.subr.bf16.mxu0 0
        %713 = vmatpush1.bf16.msra.mxu0 %v695
        %714 = vmatprep.subr.bf16.mxu0 0
        %715 = vmatpush1.bf16.msra.mxu0 %v696
        %716 = vmatprep.subr.bf16.mxu0 0
        %717 = vmatpush1.bf16.msra.mxu0 %v697
        %718 = vmatprep.subr.bf16.mxu0 0
        %719 = vmatpush1.bf16.msra.mxu0 %v698
        %720 = vmatprep.subr.bf16.mxu0 0
        %721 = vmatpush1.bf16.msra.mxu0 %v699
        %722 = vmatprep.subr.bf16.mxu0 0
        %723 = vmatpush1.bf16.msra.mxu0 %v700
        %724 = vmatprep.subr.bf16.mxu0 0
        %725 = vmatpush1.bf16.msra.mxu0 %v701
        %726 = vmatprep.subr.bf16.mxu0 0
        %727 = vmatpush1.bf16.msra.mxu0 0
        %728 = vmatprep.subr.bf16.mxu0 0
        %729 = vmatpush1.bf16.msra.mxu0 0
        %730 = vmatprep.subr.bf16.mxu0 0
        %731 = vmatpush1.bf16.msra.mxu0 0
        %732 = vmatprep.subr.bf16.mxu0 0
        %733 = vmatpush1.bf16.msra.mxu0 0
        %734 = vmatprep.subr.bf16.mxu0 0
        %735 = vmatpush1.bf16.msra.mxu0 0
        %736 = vmatprep.subr.bf16.mxu0 0
        %737 = vmatpush1.bf16.msra.mxu0 0
        %738 = vmatprep.subr.bf16.mxu0 0
        %739 = vmatpush1.bf16.msra.mxu0 0
        %740 = vmatprep.subr.bf16.mxu0 0
        %741 = vmatpush1.bf16.msra.mxu0 0
        %742 = vmatprep.mubr.bf16.mxu0 0
        %743 = vmatmul.mubr.bf16.gmra.mrb[0].mxu0 %v630
        %v744 = vpop.f32.mrb[0].mxu0
        %v745 = vadd.f32 0.0, %v744
        %v746 = vpop.f32.mrb[0].mxu0
        %v747 = vpop.f32.mrb[0].mxu0
        %v748 = vadd.f32 0.0, %v747
        %v749 = vpop.f32.mrb[0].mxu0
        %750 = vmatprep.mubr.bf16.mxu0 0
        %751 = vmatmul.mubr.bf16.gmra.mrb[0].mxu0 %v631
        %v752 = vpop.f32.mrb[0].mxu0
        %v753 = vadd.f32 0.0, %v752
        %v754 = vpop.f32.mrb[0].mxu0
        %v755 = vpop.f32.mrb[0].mxu0
        %v756 = vadd.f32 0.0, %v755
        %v757 = vpop.f32.mrb[0].mxu0
        %758 = vmatprep.mubr.bf16.mxu0 0
        %759 = vmatmul.mubr.bf16.gmra.mrb[0].mxu0 %v632
        %v760 = vpop.f32.mrb[0].mxu0
        %v761 = vadd.f32 0.0, %v760
        %v762 = vpop.f32.mrb[0].mxu0
        %v763 = vpop.f32.mrb[0].mxu0
        %v764 = vadd.f32 0.0, %v763
        %v765 = vpop.f32.mrb[0].mxu0
        %766 = vmatprep.mubr.bf16.mxu0 0
        %767 = vmatmul.mubr.bf16.gmra.mrb[0].mxu0 %v633
        %v768 = vpop.f32.mrb[0].mxu0
        %v769 = vadd.f32 0.0, %v768
        %v770 = vpop.f32.mrb[0].mxu0
        %v771 = vpop.f32.mrb[0].mxu0
        %v772 = vadd.f32 0.0, %v771
        %v773 = vpop.f32.mrb[0].mxu0
        %774 = vmatprep.mubr.bf16.mxu0 0
        %775 = vmatmul.mubr.bf16.gmra.mrb[0].mxu0 %v634
        %v776 = vpop.f32.mrb[0].mxu0
        %v777 = vadd.f32 0.0, %v776
        %v778 = vpop.f32.mrb[0].mxu0
        %v779 = vpop.f32.mrb[0].mxu0
        %v780 = vadd.f32 0.0, %v779
        %v781 = vpop.f32.mrb[0].mxu0
        %782 = vmatprep.mubr.bf16.mxu0 0
        %783 = vmatmul.mubr.bf16.gmra.mrb[0].mxu0 %v635
        %v784 = vpop.f32.mrb[0].mxu0
        %v785 = vadd.f32 0.0, %v784
        %v786 = vpop.f32.mrb[0].mxu0
        %v787 = vpop.f32.mrb[0].mxu0
        %v788 = vadd.f32 0.0, %v787
        %v789 = vpop.f32.mrb[0].mxu0
        %790 = vmatprep.mubr.bf16.mxu0 0
        %791 = vmatmul.mubr.bf16.gmra.mrb[0].mxu0 %v636
        %v792 = vpop.f32.mrb[0].mxu0
        %v793 = vadd.f32 0.0, %v792
        %v794 = vpop.f32.mrb[0].mxu0
        %v795 = vpop.f32.mrb[0].mxu0
        %v796 = vadd.f32 0.0, %v795
        %v797 = vpop.f32.mrb[0].mxu0
        %798 = vmatprep.mubr.bf16.mxu0 0
        %799 = vmatmul.mubr.bf16.gmra.mrb[0].mxu0 %v637
        %v800 = vpop.f32.mrb[0].mxu0
        %v801 = vadd.f32 0.0, %v800
        %v802 = vpop.f32.mrb[0].mxu0
        %v803 = vpop.f32.mrb[0].mxu0
        %v804 = vadd.f32 0.0, %v803
        %v805 = vpop.f32.mrb[0].mxu0
        %806 = vmatprep.mubr.bf16.mxu0 0
        %807 = vmatmul.mubr.bf16.gmra.mrb[0].mxu0 %v638
        %v808 = vpop.f32.mrb[0].mxu0
        %v809 = vadd.f32 0.0, %v808
        %v810 = vpop.f32.mrb[0].mxu0
        %v811 = vpop.f32.mrb[0].mxu0
        %v812 = vadd.f32 0.0, %v811
        %v813 = vpop.f32.mrb[0].mxu0
        %814 = vmatprep.mubr.bf16.mxu0 0
        %815 = vmatmul.mubr.bf16.gmra.mrb[0].mxu0 %v639
        %v816 = vpop.f32.mrb[0].mxu0
        %v817 = vadd.f32 0.0, %v816
        %v818 = vpop.f32.mrb[0].mxu0
        %v819 = vpop.f32.mrb[0].mxu0
        %v820 = vadd.f32 0.0, %v819
        %v821 = vpop.f32.mrb[0].mxu0
        %822 = vmatprep.mubr.bf16.mxu0 0
        %823 = vmatmul.mubr.bf16.gmra.mrb[0].mxu0 %v640
        %v824 = vpop.f32.mrb[0].mxu0
        %v825 = vadd.f32 0.0, %v824
        %v826 = vpop.f32.mrb[0].mxu0
        %v827 = vpop.f32.mrb[0].mxu0
        %v828 = vadd.f32 0.0, %v827
        %v829 = vpop.f32.mrb[0].mxu0
        %830 = vmatprep.mubr.bf16.mxu0 0
        %831 = vmatmul.mubr.bf16.gmra.mrb[0].mxu0 %v641
        %v832 = vpop.f32.mrb[0].mxu0
        %v833 = vadd.f32 0.0, %v832
        %v834 = vpop.f32.mrb[0].mxu0
        %v835 = vpop.f32.mrb[0].mxu0
        %v836 = vadd.f32 0.0, %v835
        %v837 = vpop.f32.mrb[0].mxu0
        %838 = vmatprep.mubr.bf16.mxu0 0
        %839 = vmatmul.mubr.bf16.gmra.mrb[0].mxu0 %v642
        %v840 = vpop.f32.mrb[0].mxu0
        %v841 = vadd.f32 0.0, %v840
        %v842 = vpop.f32.mrb[0].mxu0
        %v843 = vpop.f32.mrb[0].mxu0
        %v844 = vadd.f32 0.0, %v843
        %v845 = vpop.f32.mrb[0].mxu0
        %846 = vmatprep.mubr.bf16.mxu0 0
        %847 = vmatmul.mubr.bf16.gmra.mrb[0].mxu0 %v643
        %v848 = vpop.f32.mrb[0].mxu0
        %v849 = vadd.f32 0.0, %v848
        %v850 = vpop.f32.mrb[0].mxu0
        %v851 = vpop.f32.mrb[0].mxu0
        %v852 = vadd.f32 0.0, %v851
        %v853 = vpop.f32.mrb[0].mxu0
        %854 = vmatprep.mubr.bf16.mxu0 0
        %855 = vmatmul.mubr.bf16.gmra.mrb[0].mxu0 %v644
        %v856 = vpop.f32.mrb[0].mxu0
        %v857 = vadd.f32 0.0, %v856
        %v858 = vpop.f32.mrb[0].mxu0
        %v859 = vpop.f32.mrb[0].mxu0
        %v860 = vadd.f32 0.0, %v859
        %v861 = vpop.f32.mrb[0].mxu0
        %862 = vmatprep.mubr.bf16.mxu0 0
        %863 = vmatmul.mubr.bf16.gmra.mrb[0].mxu0 %v645
        %v864 = vpop.f32.mrb[0].mxu0
        %v865 = vadd.f32 0.0, %v864
        %v866 = vpop.f32.mrb[0].mxu0
        %v867 = vpop.f32.mrb[0].mxu0
        %v868 = vadd.f32 0.0, %v867
        %v869 = vpop.f32.mrb[0].mxu0
        %870 = vdwg.mxu0
        %871 = vst [vmem:[%s236] sm:$0xff] %v745
        %872 = vst [vmem:[%s236 + $0x8] sm:$0xff] %v748
        %873 = vst [vmem:[%s236 + $0x10] sm:$0xff] %v753
        %874 = vst [vmem:[%s236 + $0x18] sm:$0xff] %v756
        %875 = vst [vmem:[%s236 + $0x20] sm:$0xff] %v761
        %876 = vst [vmem:[%s236 + $0x28] sm:$0xff] %v764
        %877 = vst [vmem:[%s236 + $0x30] sm:$0xff] %v769
        %878 = vst [vmem:[%s236 + $0x38] sm:$0xff] %v772
        %879 = vst [vmem:[%s236 + $0x40] sm:$0xff] %v777
        %880 = vst [vmem:[%s236 + $0x48] sm:$0xff] %v780
        %881 = vst [vmem:[%s236 + $0x50] sm:$0xff] %v785
        %882 = vst [vmem:[%s236 + $0x58] sm:$0xff] %v788
        %883 = vst [vmem:[%s236 + $0x60] sm:$0xff] %v793
        %884 = vst [vmem:[%s236 + $0x68] sm:$0xff] %v796
        %885 = vst [vmem:[%s236 + $0x70] sm:$0xff] %v801
        %886 = vst [vmem:[%s236 + $0x78] sm:$0xff] %v804
        %887 = vst [vmem:[%s236 + $0x80] sm:$0xff] %v809
        %888 = vst [vmem:[%s236 + $0x88] sm:$0xff] %v812
        %889 = vst [vmem:[%s236 + $0x90] sm:$0xff] %v817
        %890 = vst [vmem:[%s236 + $0x98] sm:$0xff] %v820
        %891 = vst [vmem:[%s236 + $0xa0] sm:$0xff] %v825
        %892 = vst [vmem:[%s236 + $0xa8] sm:$0xff] %v828
        %893 = vst [vmem:[%s236 + $0xb0] sm:$0xff] %v833
        %894 = vst [vmem:[%s236 + $0xb8] sm:$0xff] %v836
        %895 = vst [vmem:[%s236 + $0xc0] sm:$0xff] %v841
        %896 = vst [vmem:[%s236 + $0xc8] sm:$0xff] %v844
        %897 = vst [vmem:[%s236 + $0xd0] sm:$0xff] %v849
        %898 = vst [vmem:[%s236 + $0xd8] sm:$0xff] %v852
        %899 = vst [vmem:[%s236 + $0xe0] sm:$0xff] %v857
        %900 = vst [vmem:[%s236 + $0xe8] sm:$0xff] %v860
        %901 = vst [vmem:[%s236 + $0xf0] sm:$0xff] %v865
        %902 = vst [vmem:[%s236 + $0xf8] sm:$0xff] %v868
        %s903 = sand.u32 %s117, 1
        %s904 = scalar_lea.sflag [#allocation4], %s903
        %s905 = sand.u32 %s117, 1
        %s906 = smul.addr %s905, 256
        %s907 = scalar_lea.vmem [#allocation9], %s906
        // Predicated region
        $region45: #{tpu_custom_call.1} parent=31 // pred_check
          %p908 = pneg %p127
        $region46: #{tpu_custom_call.1} parent=31 // pred_check_branch
          %910 = sbr.rel (%p908) target = $region48
        $region47: #{tpu_custom_call.1} parent=31 // pred_region
          %s911 = smul.u32 32, %s26
          %s913 = ssub.s32 4096, 4096
          %914 = vsyncadd %s904, %s913
          %s915 = sadd.s32 %s27, %s911
          %s916 = smul.addr %s915, 128
          %s917 = scalar_lea.hbm %s3, %s916
          %s918 = sshll.u32 %s907, 4
          %s919 = int_to_ptr.vmem [resolvable:$true] %s918
          %924 = dma.vmem_to_hbm [thread:$0]  %s919, 4096, %s917, %s904, 128, 128, 8
        $region48: #{tpu_custom_call.1} parent=31 // pred_fallthru
          _
      $region32: #{tpu_custom_call.1} parent=5 // pred_fallthru
        _
      %p925 = scmp.le.s32.totalorder 2, %s17
      // Predicated region
      $region49: #{tpu_custom_call.1} parent=5 // pred_check
        %p926 = pneg %p925
      $region50: #{tpu_custom_call.1} parent=5 // pred_check_branch
        %928 = sbr.rel (%p926) target = $region52
      $region51: #{tpu_custom_call.1} parent=5 // pred_region
        %s929 = ssub.s32 %s17, 2
        // Predicated region
        $region53: #{tpu_custom_call.1} parent=51 // pred_check
          %p930 = pneg %p133
        $region54: #{tpu_custom_call.1} parent=51 // pred_check_branch
          %932 = sbr.rel (%p930) target = $region56
        $region55: #{tpu_custom_call.1} parent=51 // pred_region
          %s933 = sand.u32 %s118, 1
          %s934 = scalar_lea.sflag [#allocation4], %s933
          %s935 = sand.u32 %s118, 1
          %s936 = smul.addr %s935, 256
          %s937 = scalar_lea.vmem [#allocation9], %s936
          %938 = dma.done %s934, 4096
        $region56: #{tpu_custom_call.1} parent=51 // pred_fallthru
          _
      $region52: #{tpu_custom_call.1} parent=5 // pred_fallthru
        _
    $region6: #{tpu_custom_call.1} parent=1 // loop_footer
      %s21 = sadd.s32 1, %s17
    $region7: #{tpu_custom_call.1} parent=1 // loop_footer_branch
      %16 = sbr.rel target = $region3
    $region8: #{tpu_custom_call.1} parent=1 // loop_exit
      _
    %939 = vsyncpa [#allocation3], 1
    %s940 = scalar_lea.sflag [#allocation3], 1
    %941 = vsyncpa %s940, 1
    %942 = vsyncpa [#allocation8], 1
    %943 = vsyncpa [#allocation4], 1
    %s944 = scalar_lea.sflag [#allocation4], 1
    %945 = vsyncpa %s944, 1
    %946 = vsyncpa [#allocation5], 1
    %s947 = scalar_lea.sflag [#allocation5], 1
    %948 = vsyncpa %s947, 1

</llo_original>
